<compile_context>
chip_gen: v7x
topology: tpu7x:2x2x1
jax: 0.10.0
libtpu: 0.0.40
codegen_flags: <defaults>
</compile_context>

<pallas_src>
import functools

import jax
import jax.numpy as jnp
from jax.experimental import pallas as pl
from jax.experimental.pallas import tpu as pltpu


def _round_up(x, m):
    return ((x + m - 1) // m) * m


def _fused_embedding_kernel(idx_ref, tbl_ref, out_ref):
    """Gather one tile of tokens from the fused block-diagonal table.

    idx_ref : (rows, 3) int32 -- indices already offset into the fused row
              space (word | pos1 | pos2); rows on sublanes so the broadcast
              against the lane-axis iota is a cheap VPU lane-broadcast.
    tbl_ref : (3, V_pad, D_pad) bf16 -- exact 3-way bf16 split of the f32
              fused table (hi, mid, lo); (lo + mid) + hi == f32 table exactly.
    out_ref : (rows, D_pad) f32 -- lane-dense, single unmasked store.
    """
    idx = idx_ref[...]                                   # (rows, 3)
    rows = idx.shape[0]
    v = tbl_ref.shape[1]

    cols = jax.lax.broadcasted_iota(jnp.int32, (rows, v), 1)
    hit = ((idx[:, 0:1] == cols)
           | (idx[:, 1:2] == cols)
           | (idx[:, 2:3] == cols))
    # 0.0 / 1.0 are exact in bf16; enables single-pass bf16 MXU matmuls and
    # halves the one-hot footprint vs f32.
    onehot = hit.astype(jnp.bfloat16)

    hi = tbl_ref[0]
    mid = tbl_ref[1]
    lo = tbl_ref[2]

    # The fused table is block-diagonal and the three index ranges are
    # disjoint, so every output element receives exactly ONE nonzero product:
    # each bf16 dot is exact in its f32 accumulator.  Summing in the order
    # (lo + mid) + hi reconstructs the original f32 table entry bit-exactly.
    acc = jnp.dot(onehot, lo, preferred_element_type=jnp.float32)
    acc = acc + jnp.dot(onehot, mid, preferred_element_type=jnp.float32)
    acc = acc + jnp.dot(onehot, hi, preferred_element_type=jnp.float32)
    out_ref[...] = acc


def build_fused_embedding_tables(word_table, pos1_table, pos2_table):
    """Parameter-init-time preprocessing (call ONCE, not per forward).

    Builds the fused block-diagonal table [[W,0,0],[0,P1,0],[0,0,P2]], zero
    padded to lane/MXU-friendly shape, and splits it exactly into three bf16
    planes (hi, mid, lo): 8+8+8 mantissa bits cover f32's 24.
    """
    Vw, Dw = word_table.shape
    Vp1, P1 = pos1_table.shape
    Vp2, P2 = pos2_table.shape
    assert (Vp1, P1) == (Vp2, P2), "pos1/pos2 embeddings must match"
    Vp, P = Vp1, P1

    V_comb = Vw + 2 * Vp
    D_comb = Dw + 2 * P
    # Keep padding at 128 multiples (NOT 256): larger padding only adds
    # useless one-hot compare/convert and zero-pass MXU work.
    V_pad = _round_up(V_comb, 128)
    D_pad = _round_up(D_comb, 128)

    tbl = jnp.zeros((V_pad, D_pad), jnp.float32)
    tbl = tbl.at[0:Vw, 0:Dw].set(word_table.astype(jnp.float32))
    tbl = tbl.at[Vw:Vw + Vp, Dw:Dw + P].set(pos1_table.astype(jnp.float32))
    tbl = tbl.at[Vw + Vp:V_comb, Dw + P:D_comb].set(pos2_table.astype(jnp.float32))

    hi = tbl.astype(jnp.bfloat16)
    r1 = tbl - hi.astype(jnp.float32)            # exact residual
    mid = r1.astype(jnp.bfloat16)
    lo = (r1 - mid.astype(jnp.float32)).astype(jnp.bfloat16)   # exact in bf16
    tbl3 = jnp.stack([hi, mid, lo], axis=0)      # (3, V_pad, D_pad) bf16

    dims = dict(Vw=Vw, Vp=Vp, V_comb=V_comb, D_comb=D_comb)
    return tbl3, dims


def embedding_forward(word_idx, pos1_idx, pos2_idx, tbl3, *,
                      Vw, Vp, V_comb, D_comb,
                      row_tile=256, return_padded=False):
    """x = concat([word_emb(word), pos1_emb(pos1), pos2_emb(pos2)], -1)."""
    B, L = word_idx.shape
    _, V_pad, D_pad = tbl3.shape

    # Size guard: the resident fused table and the (row_tile, V_pad) one-hot
    # scale with vocab and would blow past v7x's 32 MiB scoped / 64 MiB
    # physical VMEM long before v5e/v6e's 128 MiB.
    table_bytes = 3 * V_pad * D_pad * 2
    if table_bytes > 4 * 1024 * 1024:
        # TODO(synk): large-vocab path: PrefetchScalarGridSpec scalar-prefetch
        # of indices + make_async_copy row gather, with explicit
        # vmem_limit_bytes, instead of the resident-table one-hot matmul.
        raise NotImplementedError(
            "fused-table one-hot path is sized for small vocabularies")

    N = B * L
    # Big tiles amortize the ~0.35 us per-step overhead, but keep at least
    # two tiles whenever there is enough work so the 'parallel' grid axis can
    # shard across v7x's two TensorCores (no effect on v5e/v6e).
    if N > 8:
        row_tile = min(row_tile, _round_up((N + 1) // 2, 8))
    else:
        row_tile = 8
    N_pad = _round_up(N, row_tile)
    num_tiles = N_pad // row_tile

    # One packed (N_pad, 3) int32 index array -> a single small input DMA per
    # tile; the transposed layout puts tokens on sublanes (no XLU relayout in
    # the kernel).  Offsets fold the three lookups into one fused row space.
    idx = jnp.stack([
        word_idx.reshape(-1).astype(jnp.int32),
        pos1_idx.reshape(-1).astype(jnp.int32) + Vw,
        pos2_idx.reshape(-1).astype(jnp.int32) + Vw + Vp,
    ], axis=1)
    if N_pad > N:
        # Pad rows point at fused index V_comb: either a guaranteed-zero table
        # row (V_pad > V_comb) or no matching one-hot column (V_pad == V_comb).
        # Both yield zero rows, which are dropped below.
        idx = jnp.concatenate(
            [idx, jnp.full((N_pad - N, 3), V_comb, jnp.int32)], axis=0)

    out_pad = pl.pallas_call(
        _fused_embedding_kernel,
        out_shape=jax.ShapeDtypeStruct((N_pad, D_pad), jnp.float32),
        grid=(num_tiles,),
        in_specs=[
            pl.BlockSpec((row_tile, 3), lambda i: (i, 0)),
            # Constant block index across the grid => table stays resident in
            # VMEM (~96 KiB of bf16 here) and is never re-fetched after step 0.
            pl.BlockSpec((3, V_pad, D_pad), lambda i: (0, 0, 0)),
        ],
        out_specs=pl.BlockSpec((row_tile, D_pad), lambda i: (i, 0)),
        compiler_params=pltpu.CompilerParams(
            dimension_semantics=("parallel",)),   # v7x: 2 TCs split row tiles
    )(idx, tbl3)

    if return_padded:
        # For a downstream matmul/linear: keep the lane-dense (.., D_pad)
        # layout and fold the zero feature columns into the next weight,
        # skipping a masked sub-128-lane re-store of the activation.
        return out_pad[:N].reshape(B, L, D_pad)
    return out_pad[:N, :D_comb].reshape(B, L, D_comb)


if __name__ == "__main__":
    # Module hyper-parameters (small, consistent with the PyTorch __init__):
    #   word_embedder.word_vec_dim = 32, max_length = 8, pos_embedding_dim = 5
    B = 2                 # batch
    max_length = 8        # sequence length / max_length
    L = max_length
    word_vec_dim = 32
    pos_dim = 5
    word_vocab = 40
    pos_vocab = 2 * max_length

    key = jax.random.PRNGKey(0)
    k_w, k_p1, k_p2, k_iw, k_i1, k_i2 = jax.random.split(key, 6)

    # Deterministic "parameters" (synthetic; nn.Embedding-style tables).
    word_table = jax.random.normal(k_w, (word_vocab, word_vec_dim), jnp.float32)
    pos1_table = jax.random.normal(k_p1, (pos_vocab, pos_dim), jnp.float32)
    pos2_table = jax.random.normal(k_p2, (pos_vocab, pos_dim), jnp.float32)
    # padding_idx=0 semantics: row 0 of the position embeddings is zero.
    pos1_table = pos1_table.at[0].set(0.0)
    pos2_table = pos2_table.at[0].set(0.0)

    # Deterministic example inputs (index tensors, as in the PyTorch forward).
    # NOTE: like nn.Embedding on GPU, out-of-range indices are not checked;
    # here they silently produce zero rows.
    word_idx = jax.random.randint(k_iw, (B, L), 0, word_vocab, jnp.int32)
    pos1_idx = jax.random.randint(k_i1, (B, L), 0, pos_vocab, jnp.int32)
    pos2_idx = jax.random.randint(k_i2, (B, L), 0, pos_vocab, jnp.int32)

    # Hoisted, one-time table preprocessing (parameter-init time).
    tbl3, dims = build_fused_embedding_tables(word_table, pos1_table, pos2_table)

    # Static dims are bound as Python constants; the per-call forward is jit'd.
    fwd = jax.jit(functools.partial(embedding_forward, **dims))

    out = fwd(word_idx, pos1_idx, pos2_idx, tbl3)
    out = jax.block_until_ready(out)

    # Pure-JAX reference check (same semantics as the PyTorch forward).
    ref = jnp.concatenate(
        [word_table[word_idx], pos1_table[pos1_idx], pos2_table[pos2_idx]],
        axis=2)
    assert out.shape == (B, L, word_vec_dim + 2 * pos_dim)
    assert jnp.allclose(out, ref, atol=1e-6), "mismatch vs reference"

    print("KERNEL_OK")
</pallas_src>

<mosaic_0001>
module attributes {stable_mosaic.version = 11 : i64} {
  func.func @_fused_embedding_kernel(%arg0: i32, %arg1: memref<8x3xi32, #tpu.memory_space<vmem>>, %arg2: memref<3x128x128xbf16, #tpu.memory_space<vmem>>, %arg3: memref<8x128xf32, #tpu.memory_space<vmem>>) attributes {dimension_semantics = [#tpu.dimension_semantics<parallel>], iteration_bounds = array<i64: 2>, scalar_prefetch = 0 : i64, scratch_operands = 0 : i64, tpu.core_type = #tpu.core_type<tc>, window_params = [{transform_indices = @transform_0, window_bounds = array<i64: 8, 3>}, {pipeline_mode = #tpu.pipeline_mode<synchronous>, transform_indices = @transform_1, window_bounds = array<i64: 3, 128, 128>}, {transform_indices = @transform_2, window_bounds = array<i64: 8, 128>}]} {
    %c0 = arith.constant 0 : index
    %c0_0 = arith.constant 0 : index
    %0 = vector.load %arg1[%c0, %c0_0] : memref<8x3xi32, #tpu.memory_space<vmem>>, vector<8x3xi32>
    %1 = tpu.iota {dimensions = array<i32: 1>} : vector<8x128xi32>
    %2 = vector.extract_strided_slice %0 {offsets = [0, 0], sizes = [8, 1], strides = [1, 1]} : vector<8x3xi32> to vector<8x1xi32>
    %3 = vector.broadcast %2 : vector<8x1xi32> to vector<8x128xi32>
    %4 = arith.cmpi eq, %3, %1 : vector<8x128xi32>
    %5 = vector.extract_strided_slice %0 {offsets = [0, 1], sizes = [8, 1], strides = [1, 1]} : vector<8x3xi32> to vector<8x1xi32>
    %6 = vector.broadcast %5 : vector<8x1xi32> to vector<8x128xi32>
    %7 = arith.cmpi eq, %6, %1 : vector<8x128xi32>
    %8 = arith.ori %4, %7 : vector<8x128xi1>
    %9 = vector.extract_strided_slice %0 {offsets = [0, 2], sizes = [8, 1], strides = [1, 1]} : vector<8x3xi32> to vector<8x1xi32>
    %10 = vector.broadcast %9 : vector<8x1xi32> to vector<8x128xi32>
    %11 = arith.cmpi eq, %10, %1 : vector<8x128xi32>
    %12 = arith.ori %8, %11 : vector<8x128xi1>
    %13 = arith.extui %12 : vector<8x128xi1> to vector<8x128xi32>
    %14 = arith.sitofp %13 : vector<8x128xi32> to vector<8x128xf32>
    %15 = arith.truncf %14 : vector<8x128xf32> to vector<8x128xbf16>
    %c0_1 = arith.constant 0 : index
    %c0_2 = arith.constant 0 : index
    %c0_3 = arith.constant 0 : index
    %16 = vector.load %arg2[%c0_1, %c0_2, %c0_3] : memref<3x128x128xbf16, #tpu.memory_space<vmem>>, vector<1x128x128xbf16>
    %17 = vector.shape_cast %16 : vector<1x128x128xbf16> to vector<128x128xbf16>
    %c1 = arith.constant 1 : index
    %c0_4 = arith.constant 0 : index
    %c0_5 = arith.constant 0 : index
    %18 = vector.load %arg2[%c1, %c0_4, %c0_5] : memref<3x128x128xbf16, #tpu.memory_space<vmem>>, vector<1x128x128xbf16>
    %19 = vector.shape_cast %18 : vector<1x128x128xbf16> to vector<128x128xbf16>
    %c2 = arith.constant 2 : index
    %c0_6 = arith.constant 0 : index
    %c0_7 = arith.constant 0 : index
    %20 = vector.load %arg2[%c2, %c0_6, %c0_7] : memref<3x128x128xbf16, #tpu.memory_space<vmem>>, vector<1x128x128xbf16>
    %21 = vector.shape_cast %20 : vector<1x128x128xbf16> to vector<128x128xbf16>
    %cst = arith.constant dense<0.000000e+00> : vector<8x128xf32>
    %22 = tpu.matmul %15, %21, %cst {dimension_numbers = #tpu.dot_dimension_numbers<[1], [0], [0], [1], [0, 0, 1, 1], [], []>} : vector<8x128xbf16>, vector<128x128xbf16>, vector<8x128xf32> -> vector<8x128xf32>
    %cst_8 = arith.constant dense<0.000000e+00> : vector<8x128xf32>
    %23 = tpu.matmul %15, %19, %cst_8 {dimension_numbers = #tpu.dot_dimension_numbers<[1], [0], [0], [1], [0, 0, 1, 1], [], []>} : vector<8x128xbf16>, vector<128x128xbf16>, vector<8x128xf32> -> vector<8x128xf32>
    %24 = arith.addf %22, %23 : vector<8x128xf32>
    %cst_9 = arith.constant dense<0.000000e+00> : vector<8x128xf32>
    %25 = tpu.matmul %15, %17, %cst_9 {dimension_numbers = #tpu.dot_dimension_numbers<[1], [0], [0], [1], [0, 0, 1, 1], [], []>} : vector<8x128xbf16>, vector<128x128xbf16>, vector<8x128xf32> -> vector<8x128xf32>
    %26 = arith.addf %24, %25 : vector<8x128xf32>
    %c0_10 = arith.constant 0 : index
    %c0_11 = arith.constant 0 : index
    %27 = vector.load %arg3[%c0_10, %c0_11] : memref<8x128xf32, #tpu.memory_space<vmem>>, vector<8x128xf32>
    tpu.vector_store %arg3[%c0_10, %c0_11], %26 {strides = array<i32>} : memref<8x128xf32, #tpu.memory_space<vmem>>, vector<8x128xf32>,
    return
  }
  func.func @transform_0(%arg0: i32) -> (i32, i32) {
    %c0_i32 = arith.constant 0 : i32
    %c0_i32_0 = arith.constant 0 : i32
    return %arg0, %c0_i32 : i32, i32
  }
  func.func @transform_1(%arg0: i32) -> (i32, i32, i32) {
    %c0_i32 = arith.constant 0 : i32
    %c0_i32_0 = arith.constant 0 : i32
    %c0_i32_1 = arith.constant 0 : i32
    %c0_i32_2 = arith.constant 0 : i32
    return %c0_i32, %c0_i32_0, %c0_i32_1 : i32, i32, i32
  }
  func.func @transform_2(%arg0: i32) -> (i32, i32) {
    %c0_i32 = arith.constant 0 : i32
    %c0_i32_0 = arith.constant 0 : i32
    return %arg0, %c0_i32 : i32, i32
  }
}

</mosaic_0001>

<llo_original>
// kernel: embedding_forward.1
$region0: #{embedding_forward.1}
  #allocation0 [shape = 'u32[]', space=smem, size = 0x4, offset = 0x4, fixed_abs, tag = 'smem constant byte address 0x4 - core index']
  #allocation1 [shape = 'u32[144,128]{1,0:T(1,128)}', space=vmem, size = 0x12000, scoped, tag = 'internal scratch']
  %s0 = inlined_call_operand.vmem [shape: s32[16,3], index: 0, kind: input, shape index: {}]
  %s1 = inlined_call_operand.hbm [shape: bf16[3,128,128], index: 1, kind: input, shape index: {}]
  %s2 = inlined_call_operand.vmem [shape: f32[16,128], index: 2, kind: output, shape index: {}]
  %s3 = sld [smem:[#allocation0]]
  $region45: #{embedding_forward.1} parent=0
    _
  %s5 = ssub.s32 1, %s3
  %s6 = scalar_select 0, %s5, %s3
  $region1: #{embedding_forward.1} parent=0
    #allocation2 [shape = 'u8[98304]{0}', space=vmem, size = 0x18000, scoped, tag = 'input window, operand 1, single buffered']
    #allocation3 [shape = 's32[2]{0}', space=sflag, size = 0x8, scoped, tag = 'scoped memory for embedding_forward.1']
    %7 = vsyncpa [#allocation3], 0
    loop: start=0, step=1, limit=4
    $region2: #{embedding_forward.1} parent=1 // loop_pre_header
      _
    $region3: #{embedding_forward.1} parent=1 // loop_header
      %s9 = sphi 0, %s13
      %p10 = scmp.ge.s32.totalorder %s9, 4
      %s19 = sphi 0, %s21
      %s22 = sphi 0, %s19
      %s23 = sphi 0, %s22
      %s39 = sphi 0, %s23
      %s43 = sphi 0, %s43
      %s45 = sphi 0, %s43
      %s46 = sphi 0, %s45
      %s60 = sphi 0, %s46
      %s66 = sphi 0, %s68
      %s69 = sphi 0, %s66
      %s70 = sphi 0, %s69
      %s86 = sphi 0, %s70
    $region4: #{embedding_forward.1} parent=1 // loop_header_branch
      %12 = sbr.rel (%p10) target = $region8
    $region5: #{embedding_forward.1} parent=1 // loop_body
      %s14 = ssub.s32 %s9, 1
      %s15 = ssub.s32 %s9, 2
      %s16 = sadd.s32 %s9, 1
      %s17 = ssub.s32 %s9, %s16
      %p18 = scmp.eq.s32.totalorder %s17, 0
      %s20 = sadd.s32 %s19, 1
      %s21 = scalar_select %p18, %s19, %s20
      %p24 = pneg %p18
      %p25 = scmp.eq.s32.totalorder %s9, 1
      %p26 = por %p24, %p25
      %p27 = scmp.ne.s32.totalorder %s19, %s22
      %p28 = scmp.eq.s32.totalorder %s9, 0
      %p29 = por %p27, %p28
      %p30 = scmp.ne.s32.totalorder %s19, %s22
      %p31 = scmp.eq.s32.totalorder %s14, 1
      %p32 = por %p30, %p31
      %p33 = scmp.ne.s32.totalorder %s22, %s23
      %p34 = scmp.eq.s32.totalorder %s14, 0
      %p35 = por %p33, %p34
      %p36 = scmp.ne.s32.totalorder %s22, %s23
      %p37 = scmp.eq.s32.totalorder %s15, 1
      %p38 = por %p36, %p37
      %p40 = scmp.ne.s32.totalorder %s23, %s39
      %p41 = scmp.eq.s32.totalorder %s15, 0
      %p42 = por %p40, %p41
      %s44 = sadd.s32 %s43, 1
      %p47 = scmp.eq.s32.totalorder %s9, 1
      %p48 = scmp.ne.s32.totalorder %s43, %s45
      %p49 = scmp.eq.s32.totalorder %s9, 0
      %p50 = por %p48, %p49
      %p51 = scmp.ne.s32.totalorder %s43, %s45
      %p52 = scmp.eq.s32.totalorder %s14, 1
      %p53 = por %p51, %p52
      %p54 = scmp.ne.s32.totalorder %s45, %s46
      %p55 = scmp.eq.s32.totalorder %s14, 0
      %p56 = por %p54, %p55
      %p57 = scmp.ne.s32.totalorder %s45, %s46
      %p58 = scmp.eq.s32.totalorder %s15, 1
      %p59 = por %p57, %p58
      %p61 = scmp.ne.s32.totalorder %s46, %s60
      %p62 = scmp.eq.s32.totalorder %s15, 0
      %p63 = por %p61, %p62
      %s64 = ssub.s32 %s9, %s16
      %p65 = scmp.eq.s32.totalorder %s64, 0
      %s67 = sadd.s32 %s66, 1
      %s68 = scalar_select %p65, %s66, %s67
      %p71 = pneg %p65
      %p72 = scmp.eq.s32.totalorder %s9, 1
      %p73 = por %p71, %p72
      %p74 = scmp.ne.s32.totalorder %s66, %s69
      %p75 = scmp.eq.s32.totalorder %s9, 0
      %p76 = por %p74, %p75
      %p77 = scmp.ne.s32.totalorder %s66, %s69
      %p78 = scmp.eq.s32.totalorder %s14, 1
      %p79 = por %p77, %p78
      %p80 = scmp.ne.s32.totalorder %s69, %s70
      %p81 = scmp.eq.s32.totalorder %s14, 0
      %p82 = por %p80, %p81
      %p83 = scmp.ne.s32.totalorder %s69, %s70
      %p84 = scmp.eq.s32.totalorder %s15, 1
      %p85 = por %p83, %p84
      %p87 = scmp.ne.s32.totalorder %s70, %s86
      %p88 = scmp.eq.s32.totalorder %s15, 0
      %p89 = por %p87, %p88
      %p90 = scmp.le.s32.totalorder 1, %s9
      %p91 = scmp.lt.s32.totalorder %s9, 3
      %p92 = pnand %p90, %p91
      %p93 = pneg %p92
      // Predicated region
      $region9: #{embedding_forward.1} parent=5 // pred_check
        _
      $region10: #{embedding_forward.1} parent=5 // pred_check_branch
        %95 = sbr.rel (%p92) target = $region12
      $region11: #{embedding_forward.1} parent=5 // pred_region
        %s96 = ssub.s32 %s9, 1
        // Predicated region
        $region13: #{embedding_forward.1} parent=11 // pred_check
          %p97 = pneg %p56
        $region14: #{embedding_forward.1} parent=11 // pred_check_branch
          %99 = sbr.rel (%p97) target = $region16
        $region15: #{embedding_forward.1} parent=11 // pred_region
          %s101 = ssub.s32 3072, 3072
          %102 = vsyncadd [#allocation3], %s101
          %s103 = sshll.u32 [#allocation2], 4
          %s104 = int_to_ptr.vmem [resolvable:$true] %s103
          %109 = dma.hbm_to_vmem [thread:$0]  %s1, 3072, %s104, [#allocation3], 64, 64, 4
        $region16: #{embedding_forward.1} parent=11 // pred_fallthru
          _
      $region12: #{embedding_forward.1} parent=5 // pred_fallthru
        _
      %p110 = scmp.lt.s32.totalorder %s9, 2
      // Predicated region
      $region17: #{embedding_forward.1} parent=5 // pred_check
        %p111 = pneg %p110
      $region18: #{embedding_forward.1} parent=5 // pred_check_branch
        %113 = sbr.rel (%p111) target = $region20
      $region19: #{embedding_forward.1} parent=5 // pred_region
        // Predicated region
        $region21: #{embedding_forward.1} parent=19 // pred_check
          %p114 = pneg %p29
        $region22: #{embedding_forward.1} parent=19 // pred_check_branch
          %116 = sbr.rel (%p114) target = $region24
        $region23: #{embedding_forward.1} parent=19 // pred_region
          %p117 = scmp.lt.s32.totalorder %s9, 1
          %s118 = scalar_select %p117, %s9, 1
          %s119 = smul.addr %s118, 8
          %s120 = scalar_lea.vmem %s0, %s119
        $region24: #{embedding_forward.1} parent=19 // pred_fallthru
          _
      $region20: #{embedding_forward.1} parent=5 // pred_fallthru
        _
      %p121 = scmp.le.s32.totalorder 1, %s9
      %p122 = scmp.lt.s32.totalorder %s9, 3
      %p123 = pnand %p121, %p122
      %p124 = pneg %p123
      // Predicated region
      $region25: #{embedding_forward.1} parent=5 // pred_check
        _
      $region26: #{embedding_forward.1} parent=5 // pred_check_branch
        %126 = sbr.rel (%p123) target = $region28
      $region27: #{embedding_forward.1} parent=5 // pred_region
        %s127 = ssub.s32 %s9, 1
        // Predicated region
        $region29: #{embedding_forward.1} parent=27 // pred_check
          %p128 = pneg %p56
        $region30: #{embedding_forward.1} parent=27 // pred_check_branch
          %130 = sbr.rel (%p128) target = $region32
        $region31: #{embedding_forward.1} parent=27 // pred_region
          %131 = dma.done [#allocation3], 3072
        $region32: #{embedding_forward.1} parent=27 // pred_fallthru
          _
        %p132 = scmp.lt.s32.totalorder %s14, 1
        %s133 = scalar_select %p132, %s14, 1
        %s134 = smul.addr %s133, 8
        %s135 = scalar_lea.vmem %s0, %s134
        %p136 = pneg %p35
        %p137 = pneg %p32
        %p138 = pneg %p56
        %p139 = pneg %p53
        %p140 = pneg %p82
        %p141 = pneg %p79
        %p142 = scmp.lt.s32.totalorder %s14, 1
        %s143 = scalar_select %p142, %s14, 1
        %s144 = smul.addr %s143, 8
        %s145 = scalar_lea.vmem %s2, %s144
        %p146 = scmp.lt.s32.totalorder %s14, 1
        %s147 = scalar_select %p146, %s14, 1
        %s148 = smul.addr %s147, 8
        %s149 = scalar_lea.vmem %s0, %s148
        %p150 = scmp.lt.s32.totalorder %s14, 1
        %s151 = scalar_select %p150, %s14, 1
        %s152 = smul.addr %s151, 8
        %s153 = scalar_lea.vmem %s2, %s152
        %v155 = vld [vmem:[%s149] sm:$0xff]
        %v156 = vlaneseq
        %v157 = vand.u32 %v156, 127
        %158 = vset.pattern.permute.xlu0 0
        %159 = vperm.xlu0 %158, %v155
        %v160 = vpop.permute.xlu0 %159
        %vm161 = vcmp.eq.s32.totalorder %v160, %v157
        %162 = vset.pattern.permute.xlu0 1
        %163 = vperm.xlu0 %162, %v155
        %v164 = vpop.permute.xlu0 %163
        %vm165 = vcmp.eq.s32.totalorder %v164, %v157
        %vm166 = vmor %vm161, %vm165
        %167 = vset.pattern.permute.xlu0 2
        %168 = vperm.xlu0 %167, %v155
        %v169 = vpop.permute.xlu0 %168
        %vm170 = vcmp.eq.s32.totalorder %v169, %v157
        %vm171 = vmor %vm166, %vm170
        %v172 = vsel %vm171, 1, 0
        %v173 = vcvt.s32.f32 %v172
        %v174 = vpack.c.bf16 %v173, %v173
        %v175 = vld [vmem:[#allocation2] sm:$0xf]
        %v176 = vld [vmem:[#allocation2 + $0x4] sm:$0xf]
        %v177 = vld [vmem:[#allocation2 + $0x8] sm:$0xf]
        %v178 = vld [vmem:[#allocation2 + $0xc] sm:$0xf]
        %v179 = vld [vmem:[#allocation2 + $0x10] sm:$0xf]
        %v180 = vld [vmem:[#allocation2 + $0x14] sm:$0xf]
        %v181 = vld [vmem:[#allocation2 + $0x18] sm:$0xf]
        %v182 = vld [vmem:[#allocation2 + $0x1c] sm:$0xf]
        %v183 = vld [vmem:[#allocation2 + $0x20] sm:$0xf]
        %v184 = vld [vmem:[#allocation2 + $0x24] sm:$0xf]
        %v185 = vld [vmem:[#allocation2 + $0x28] sm:$0xf]
        %v186 = vld [vmem:[#allocation2 + $0x2c] sm:$0xf]
        %v187 = vld [vmem:[#allocation2 + $0x30] sm:$0xf]
        %v188 = vld [vmem:[#allocation2 + $0x34] sm:$0xf]
        %v189 = vld [vmem:[#allocation2 + $0x38] sm:$0xf]
        %v190 = vld [vmem:[#allocation2 + $0x3c] sm:$0xf]
        %s191 = scalar_lea.vmem [#allocation2], 64
        %v192 = vld [vmem:[%s191] sm:$0xf]
        %v193 = vld [vmem:[%s191 + $0x4] sm:$0xf]
        %v194 = vld [vmem:[%s191 + $0x8] sm:$0xf]
        %v195 = vld [vmem:[%s191 + $0xc] sm:$0xf]
        %v196 = vld [vmem:[%s191 + $0x10] sm:$0xf]
        %v197 = vld [vmem:[%s191 + $0x14] sm:$0xf]
        %v198 = vld [vmem:[%s191 + $0x18] sm:$0xf]
        %v199 = vld [vmem:[%s191 + $0x1c] sm:$0xf]
        %v200 = vld [vmem:[%s191 + $0x20] sm:$0xf]
        %v201 = vld [vmem:[%s191 + $0x24] sm:$0xf]
        %v202 = vld [vmem:[%s191 + $0x28] sm:$0xf]
        %v203 = vld [vmem:[%s191 + $0x2c] sm:$0xf]
        %v204 = vld [vmem:[%s191 + $0x30] sm:$0xf]
        %v205 = vld [vmem:[%s191 + $0x34] sm:$0xf]
        %v206 = vld [vmem:[%s191 + $0x38] sm:$0xf]
        %v207 = vld [vmem:[%s191 + $0x3c] sm:$0xf]
        %s208 = scalar_lea.vmem [#allocation2], 128
        %v209 = vld [vmem:[%s208] sm:$0xf]
        %v210 = vld [vmem:[%s208 + $0x4] sm:$0xf]
        %v211 = vld [vmem:[%s208 + $0x8] sm:$0xf]
        %v212 = vld [vmem:[%s208 + $0xc] sm:$0xf]
        %v213 = vld [vmem:[%s208 + $0x10] sm:$0xf]
        %v214 = vld [vmem:[%s208 + $0x14] sm:$0xf]
        %v215 = vld [vmem:[%s208 + $0x18] sm:$0xf]
        %v216 = vld [vmem:[%s208 + $0x1c] sm:$0xf]
        %v217 = vld [vmem:[%s208 + $0x20] sm:$0xf]
        %v218 = vld [vmem:[%s208 + $0x24] sm:$0xf]
        %v219 = vld [vmem:[%s208 + $0x28] sm:$0xf]
        %v220 = vld [vmem:[%s208 + $0x2c] sm:$0xf]
        %v221 = vld [vmem:[%s208 + $0x30] sm:$0xf]
        %v222 = vld [vmem:[%s208 + $0x34] sm:$0xf]
        %v223 = vld [vmem:[%s208 + $0x38] sm:$0xf]
        %v224 = vld [vmem:[%s208 + $0x3c] sm:$0xf]
        %v241 = vunpack.c.l.b16 %v192
        %v242 = vunpack.c.l.b16 %v193
        %v243 = vunpack.c.l.b16 %v194
        %v244 = vunpack.c.l.b16 %v195
        %v245 = vunpack.c.l.b16 %v196
        %v246 = vunpack.c.l.b16 %v197
        %v247 = vunpack.c.l.b16 %v198
        %v248 = vunpack.c.l.b16 %v199
        %v249 = vunpack.c.l.b16 %v200
        %v250 = vunpack.c.l.b16 %v201
        %v251 = vunpack.c.l.b16 %v202
        %v252 = vunpack.c.l.b16 %v203
        %v253 = vunpack.c.l.b16 %v204
        %v254 = vunpack.c.l.b16 %v205
        %v255 = vunpack.c.l.b16 %v206
        %v256 = vunpack.c.l.b16 %v207
        %v257 = vpack.c.b16 %v242, %v241
        %v258 = vpack.c.b16 %v244, %v243
        %v259 = vpack.c.b16 %v246, %v245
        %v260 = vpack.c.b16 %v248, %v247
        %v261 = vpack.c.b16 %v250, %v249
        %v262 = vpack.c.b16 %v252, %v251
        %v263 = vpack.c.b16 %v254, %v253
        %v264 = vpack.c.b16 %v256, %v255
        %273 = vmatprep.subr.bf16.mxu0 0
        %274 = vmatpush1.bf16.msra.mxu0 %v257
        %275 = vmatprep.subr.bf16.mxu0 0
        %276 = vmatpush1.bf16.msra.mxu0 %v258
        %277 = vmatprep.subr.bf16.mxu0 0
        %278 = vmatpush1.bf16.msra.mxu0 %v259
        %279 = vmatprep.subr.bf16.mxu0 0
        %280 = vmatpush1.bf16.msra.mxu0 %v260
        %281 = vmatprep.subr.bf16.mxu0 0
        %282 = vmatpush1.bf16.msra.mxu0 %v261
        %283 = vmatprep.subr.bf16.mxu0 0
        %284 = vmatpush1.bf16.msra.mxu0 %v262
        %285 = vmatprep.subr.bf16.mxu0 0
        %286 = vmatpush1.bf16.msra.mxu0 %v263
        %287 = vmatprep.subr.bf16.mxu0 0
        %288 = vmatpush1.bf16.msra.mxu0 %v264
        %289 = vmatprep.subr.bf16.mxu0 0
        %290 = vmatpush1.bf16.msra.mxu0 0
        %291 = vmatprep.subr.bf16.mxu0 0
        %292 = vmatpush1.bf16.msra.mxu0 0
        %293 = vmatprep.subr.bf16.mxu0 0
        %294 = vmatpush1.bf16.msra.mxu0 0
        %295 = vmatprep.subr.bf16.mxu0 0
        %296 = vmatpush1.bf16.msra.mxu0 0
        %297 = vmatprep.subr.bf16.mxu0 0
        %298 = vmatpush1.bf16.msra.mxu0 0
        %299 = vmatprep.subr.bf16.mxu0 0
        %300 = vmatpush1.bf16.msra.mxu0 0
        %301 = vmatprep.subr.bf16.mxu0 0
        %302 = vmatpush1.bf16.msra.mxu0 0
        %303 = vmatprep.subr.bf16.mxu0 0
        %304 = vmatpush1.bf16.msra.mxu0 0
        %305 = vmatprep.mubr.bf16.mxu0 0
        %306 = vmatmul.mubr.bf16.gmra.mrb[0].mxu0 %v174
        %v307 = vpop.f32.mrb[0].mxu0
        %v308 = vadd.f32 0.0, %v307
        %v309 = vpop.f32.mrb[0].mxu0
        %v310 = vpop.f32.mrb[0].mxu0
        %v311 = vpop.f32.mrb[0].mxu0
        %312 = vdwg.mxu0
        %v329 = vunpack.c.l.b16 %v209
        %v330 = vunpack.c.l.b16 %v210
        %v331 = vunpack.c.l.b16 %v211
        %v332 = vunpack.c.l.b16 %v212
        %v333 = vunpack.c.l.b16 %v213
        %v334 = vunpack.c.l.b16 %v214
        %v335 = vunpack.c.l.b16 %v215
        %v336 = vunpack.c.l.b16 %v216
        %v337 = vunpack.c.l.b16 %v217
        %v338 = vunpack.c.l.b16 %v218
        %v339 = vunpack.c.l.b16 %v219
        %v340 = vunpack.c.l.b16 %v220
        %v341 = vunpack.c.l.b16 %v221
        %v342 = vunpack.c.l.b16 %v222
        %v343 = vunpack.c.l.b16 %v223
        %v344 = vunpack.c.l.b16 %v224
        %v345 = vpack.c.b16 %v330, %v329
        %v346 = vpack.c.b16 %v332, %v331
        %v347 = vpack.c.b16 %v334, %v333
        %v348 = vpack.c.b16 %v336, %v335
        %v349 = vpack.c.b16 %v338, %v337
        %v350 = vpack.c.b16 %v340, %v339
        %v351 = vpack.c.b16 %v342, %v341
        %v352 = vpack.c.b16 %v344, %v343
        %361 = vmatprep.subr.bf16.mxu0 0
        %362 = vmatpush1.bf16.msra.mxu0 %v345
        %363 = vmatprep.subr.bf16.mxu0 0
        %364 = vmatpush1.bf16.msra.mxu0 %v346
        %365 = vmatprep.subr.bf16.mxu0 0
        %366 = vmatpush1.bf16.msra.mxu0 %v347
        %367 = vmatprep.subr.bf16.mxu0 0
        %368 = vmatpush1.bf16.msra.mxu0 %v348
        %369 = vmatprep.subr.bf16.mxu0 0
        %370 = vmatpush1.bf16.msra.mxu0 %v349
        %371 = vmatprep.subr.bf16.mxu0 0
        %372 = vmatpush1.bf16.msra.mxu0 %v350
        %373 = vmatprep.subr.bf16.mxu0 0
        %374 = vmatpush1.bf16.msra.mxu0 %v351
        %375 = vmatprep.subr.bf16.mxu0 0
        %376 = vmatpush1.bf16.msra.mxu0 %v352
        %377 = vmatprep.subr.bf16.mxu0 0
        %378 = vmatpush1.bf16.msra.mxu0 0
        %379 = vmatprep.subr.bf16.mxu0 0
        %380 = vmatpush1.bf16.msra.mxu0 0
        %381 = vmatprep.subr.bf16.mxu0 0
        %382 = vmatpush1.bf16.msra.mxu0 0
        %383 = vmatprep.subr.bf16.mxu0 0
        %384 = vmatpush1.bf16.msra.mxu0 0
        %385 = vmatprep.subr.bf16.mxu0 0
        %386 = vmatpush1.bf16.msra.mxu0 0
        %387 = vmatprep.subr.bf16.mxu0 0
        %388 = vmatpush1.bf16.msra.mxu0 0
        %389 = vmatprep.subr.bf16.mxu0 0
        %390 = vmatpush1.bf16.msra.mxu0 0
        %391 = vmatprep.subr.bf16.mxu0 0
        %392 = vmatpush1.bf16.msra.mxu0 0
        %393 = vmatprep.mubr.bf16.mxu0 0
        %394 = vmatmul.mubr.bf16.gmra.mrb[0].mxu0 %v174
        %v395 = vpop.f32.mrb[0].mxu0
        %v396 = vadd.f32 %v308, %v395
        %v397 = vpop.f32.mrb[0].mxu0
        %v398 = vpop.f32.mrb[0].mxu0
        %v399 = vpop.f32.mrb[0].mxu0
        %400 = vdwg.mxu0
        %v417 = vunpack.c.l.b16 %v175
        %v418 = vunpack.c.l.b16 %v176
        %v419 = vunpack.c.l.b16 %v177
        %v420 = vunpack.c.l.b16 %v178
        %v421 = vunpack.c.l.b16 %v179
        %v422 = vunpack.c.l.b16 %v180
        %v423 = vunpack.c.l.b16 %v181
        %v424 = vunpack.c.l.b16 %v182
        %v425 = vunpack.c.l.b16 %v183
        %v426 = vunpack.c.l.b16 %v184
        %v427 = vunpack.c.l.b16 %v185
        %v428 = vunpack.c.l.b16 %v186
        %v429 = vunpack.c.l.b16 %v187
        %v430 = vunpack.c.l.b16 %v188
        %v431 = vunpack.c.l.b16 %v189
        %v432 = vunpack.c.l.b16 %v190
        %v433 = vpack.c.b16 %v418, %v417
        %v434 = vpack.c.b16 %v420, %v419
        %v435 = vpack.c.b16 %v422, %v421
        %v436 = vpack.c.b16 %v424, %v423
        %v437 = vpack.c.b16 %v426, %v425
        %v438 = vpack.c.b16 %v428, %v427
        %v439 = vpack.c.b16 %v430, %v429
        %v440 = vpack.c.b16 %v432, %v431
        %449 = vmatprep.subr.bf16.mxu0 0
        %450 = vmatpush1.bf16.msra.mxu0 %v433
        %451 = vmatprep.subr.bf16.mxu0 0
        %452 = vmatpush1.bf16.msra.mxu0 %v434
        %453 = vmatprep.subr.bf16.mxu0 0
        %454 = vmatpush1.bf16.msra.mxu0 %v435
        %455 = vmatprep.subr.bf16.mxu0 0
        %456 = vmatpush1.bf16.msra.mxu0 %v436
        %457 = vmatprep.subr.bf16.mxu0 0
        %458 = vmatpush1.bf16.msra.mxu0 %v437
        %459 = vmatprep.subr.bf16.mxu0 0
        %460 = vmatpush1.bf16.msra.mxu0 %v438
        %461 = vmatprep.subr.bf16.mxu0 0
        %462 = vmatpush1.bf16.msra.mxu0 %v439
        %463 = vmatprep.subr.bf16.mxu0 0
        %464 = vmatpush1.bf16.msra.mxu0 %v440
        %465 = vmatprep.subr.bf16.mxu0 0
        %466 = vmatpush1.bf16.msra.mxu0 0
        %467 = vmatprep.subr.bf16.mxu0 0
        %468 = vmatpush1.bf16.msra.mxu0 0
        %469 = vmatprep.subr.bf16.mxu0 0
        %470 = vmatpush1.bf16.msra.mxu0 0
        %471 = vmatprep.subr.bf16.mxu0 0
        %472 = vmatpush1.bf16.msra.mxu0 0
        %473 = vmatprep.subr.bf16.mxu0 0
        %474 = vmatpush1.bf16.msra.mxu0 0
        %475 = vmatprep.subr.bf16.mxu0 0
        %476 = vmatpush1.bf16.msra.mxu0 0
        %477 = vmatprep.subr.bf16.mxu0 0
        %478 = vmatpush1.bf16.msra.mxu0 0
        %479 = vmatprep.subr.bf16.mxu0 0
        %480 = vmatpush1.bf16.msra.mxu0 0
        %481 = vmatprep.mubr.bf16.mxu0 0
        %482 = vmatmul.mubr.bf16.gmra.mrb[0].mxu0 %v174
        %v483 = vpop.f32.mrb[0].mxu0
        %v484 = vadd.f32 0.0, %v483
        %v485 = vpop.f32.mrb[0].mxu0
        %v486 = vpop.f32.mrb[0].mxu0
        %v487 = vpop.f32.mrb[0].mxu0
        %488 = vdwg.mxu0
        %v489 = vadd.f32 %v396, %v484
        %490 = vst [vmem:[%s153] sm:$0xff] %v489
        %p491 = scmp.lt.s32.totalorder %s14, 1
        %s492 = scalar_select %p491, %s14, 1
        %s493 = smul.addr %s492, 8
        %s494 = scalar_lea.vmem %s2, %s493
        // Predicated region
        $region33: #{embedding_forward.1} parent=27 // pred_check
          %p495 = pneg %p79
        $region34: #{embedding_forward.1} parent=27 // pred_check_branch
          %497 = sbr.rel (%p495) target = $region36
        $region35: #{embedding_forward.1} parent=27 // pred_region
          _
        $region36: #{embedding_forward.1} parent=27 // pred_fallthru
          _
      $region28: #{embedding_forward.1} parent=5 // pred_fallthru
        _
      %p498 = scmp.le.s32.totalorder 2, %s9
      // Predicated region
      $region37: #{embedding_forward.1} parent=5 // pred_check
        %p499 = pneg %p498
      $region38: #{embedding_forward.1} parent=5 // pred_check_branch
        %501 = sbr.rel (%p499) target = $region40
      $region39: #{embedding_forward.1} parent=5 // pred_region
        %s502 = ssub.s32 %s9, 2
        // Predicated region
        $region41: #{embedding_forward.1} parent=39 // pred_check
          %p503 = pneg %p85
        $region42: #{embedding_forward.1} parent=39 // pred_check_branch
          %505 = sbr.rel (%p503) target = $region44
        $region43: #{embedding_forward.1} parent=39 // pred_region
          %p506 = scmp.lt.s32.totalorder %s15, 1
          %s507 = scalar_select %p506, %s15, 1
          %s508 = smul.addr %s507, 8
          %s509 = scalar_lea.vmem %s2, %s508
        $region44: #{embedding_forward.1} parent=39 // pred_fallthru
          _
      $region40: #{embedding_forward.1} parent=5 // pred_fallthru
        _
    $region6: #{embedding_forward.1} parent=1 // loop_footer
      %s13 = sadd.s32 1, %s9
    $region7: #{embedding_forward.1} parent=1 // loop_footer_branch
      %8 = sbr.rel target = $region3
    $region8: #{embedding_forward.1} parent=1 // loop_exit
      _
    %510 = vsyncpa [#allocation3], 1
    %s511 = scalar_lea.sflag [#allocation3], 1
    %512 = vsyncpa %s511, 1

</llo_original>
